<compile_context>
chip_gen: v6e
topology: v6e:2x2x1
jax: 0.10.0
libtpu: 0.0.40
codegen_flags: <defaults>
</compile_context>

<pallas_src>
import functools

import jax
import jax.numpy as jnp
from jax.experimental import pallas as pl
from jax.experimental.pallas import tpu as pltpu


def _round_up(a: int, b: int) -> int:
    return ((a + b - 1) // b) * b


def _cdiv(a: int, b: int) -> int:
    return -(-a // b)


def prepare_params(w1, b1, w2, b2, wo, bo, compute_dtype=jnp.bfloat16):
    """One-time parameter prep (hoisted out of the per-forward hot path).

    The kernel computes in batch-on-lanes orientation, so PyTorch's native (out, in)
    Linear weight layout is exactly what the MXU needs -- no transposes.  Weights are
    cast to the compute dtype (bf16 by default, MXU-native on every generation);
    biases stay f32 and are packed into a single (h1 + h2 + 1, 1) column.
    """
    w1c = jnp.asarray(w1, jnp.float32).astype(compute_dtype)            # (h1, n_in)
    w2c = jnp.asarray(w2, jnp.float32).astype(compute_dtype)            # (h2, h1)
    woc = jnp.asarray(wo, jnp.float32).reshape(1, -1).astype(compute_dtype)  # (1, h2)
    bias = jnp.concatenate([
        jnp.asarray(b1, jnp.float32).reshape(-1),
        jnp.asarray(b2, jnp.float32).reshape(-1),
        jnp.asarray(bo, jnp.float32).reshape(-1),
    ]).reshape(-1, 1)                                                    # (h1+h2+1, 1) f32
    return (w1c, w2c, woc, bias)


def _mlp_kernel(x_ref, w1_ref, w2_ref, wo_ref, bias_ref, o_ref):
    h1 = w1_ref.shape[0]
    h2 = w2_ref.shape[0]
    cdt = w1_ref.dtype

    # Batch-on-lanes: transpose the (TB, n_in) tile once (f32 XLU transpose of TB*n_in
    # elems), then cast in-kernel (free VPU filler hidden under the DMA).
    xt = x_ref[...].T.astype(cdt)                                        # (n_in, TB)

    # Hidden layer 1: (h1, n_in) @ (n_in, TB) -> (h1, TB); MXU N axis = batch tile.
    a1 = jnp.dot(w1_ref[...], xt, preferred_element_type=jnp.float32)
    a1 = jnp.maximum(a1 + bias_ref[0:h1, :], 0.0).astype(cdt)           # f32 bias + ReLU

    # Hidden layer 2: (h2, h1) @ (h1, TB) -> (h2, TB).
    a2 = jnp.dot(w2_ref[...], a1, preferred_element_type=jnp.float32)
    a2 = jnp.maximum(a2 + bias_ref[h1:h1 + h2, :], 0.0).astype(cdt)

    # Output layer as a real MXU matmul: (1, h2) @ (h2, TB) -> (1, TB), lane-dense logits.
    logit = jnp.dot(wo_ref[...], a2, preferred_element_type=jnp.float32)
    logit = logit + bias_ref[h1 + h2:h1 + h2 + 1, :]

    # Sigmoid: exp on EUP + approximate EUP reciprocal; clamp (approx recip can overshoot 1).
    prob = pl.reciprocal(1.0 + jnp.exp(-logit), approx=True)
    o_ref[...] = jnp.clip(prob, 0.0, 1.0)                               # (1, TB)


def _choose_batch_tile(B: int, block_b: int) -> int:
    """Batch tile: single 8-row-aligned tile for small B; otherwise lane-aligned (x128)
    with at least 2 tiles so the v7x second TensorCore gets work (neutral on v5e/v6e)."""
    if B <= 256:
        return _round_up(max(B, 1), 8)
    half = _round_up(_cdiv(B, 2), 128)
    return min(_round_up(block_b, 128), half)


@functools.partial(jax.jit, static_argnames=("block_b",))
def binary_classifier_mlp(x, params, *, block_b=8192):
    """Forward pass. x: (B, n_inputs) -> (B,) probabilities ((), if B == 1, matching .squeeze())."""
    w1c, w2c, woc, bias = params
    B, n_in = x.shape
    h1 = w1c.shape[0]
    h2 = w2c.shape[0]

    tb = _choose_batch_tile(B, block_b)
    nt = _cdiv(B, tb)

    # Right-sized VMEM budget: double-buffered x/out tiles + params + per-layer
    # activation intermediates (f32 + compute-dtype copies), with headroom.
    x_tile_bytes = tb * n_in * x.dtype.itemsize
    o_tile_bytes = tb * 4
    param_bytes = sum(int(p.size) * p.dtype.itemsize for p in (w1c, w2c, woc, bias))
    interm_bytes = tb * (n_in + h1 + h2 + 2) * 8
    vmem_bytes = max(
        4 << 20,
        2 * (x_tile_bytes + o_tile_bytes) + 4 * param_bytes + interm_bytes + (2 << 20),
    )

    cost = pl.CostEstimate(
        flops=2 * B * (n_in * h1 + h1 * h2 + h2),
        transcendentals=B,
        bytes_accessed=B * n_in * x.dtype.itemsize + param_bytes + B * 4,
    )

    const0 = lambda i: (0, 0)
    out = pl.pallas_call(
        _mlp_kernel,
        out_shape=jax.ShapeDtypeStruct((nt, tb), jnp.float32),
        grid=(nt,),
        in_specs=[
            pl.BlockSpec((tb, n_in), lambda i: (i, 0)),      # x: batch-tiled (no pad/cast on host)
            pl.BlockSpec((h1, n_in), const0),                # weights/biases: VMEM-resident
            pl.BlockSpec((h2, h1), const0),
            pl.BlockSpec((1, h2), const0),
            pl.BlockSpec((h1 + h2 + 1, 1), const0),          # packed [b1; b2; bo] column
        ],
        out_specs=pl.BlockSpec((1, tb), lambda i: (i, 0)),   # lane-dense probability row per tile
        compiler_params=pltpu.CompilerParams(
            dimension_semantics=("parallel",),
            vmem_limit_bytes=int(vmem_bytes),
        ),
        cost_estimate=cost,
    )(x, w1c, w2c, woc, bias)

    probs = out.reshape(-1)[:B]
    if B == 1:
        probs = probs.reshape(())   # torch .squeeze() returns a 0-d tensor for B == 1
    return probs


if __name__ == "__main__":
    # Config implied by the module: n_inputs=16, layers=[32, 32], activation=ReLU.
    n_inputs, h1, h2 = 16, 32, 32
    key = jax.random.PRNGKey(0)
    k_x, k_x2, k_x3, k_w1, k_b1, k_w2, k_b2, k_wo, k_bo = jax.random.split(key, 9)

    def uinit(k, shape, fan_in):
        bound = 1.0 / jnp.sqrt(fan_in)
        return jax.random.uniform(k, shape, jnp.float32, -bound, bound)

    # PyTorch nn.Linear layout: weight (out, in), bias (out,).
    w1 = uinit(k_w1, (h1, n_inputs), n_inputs)
    b1 = uinit(k_b1, (h1,), n_inputs)
    w2 = uinit(k_w2, (h2, h1), h1)
    b2 = uinit(k_b2, (h2,), h1)
    wo = uinit(k_wo, (1, h2), h2)
    bo = uinit(k_bo, (1,), h2)

    params = prepare_params(w1, b1, w2, b2, wo, bo)   # one-time (hoisted) prep

    def ref_forward(xin):
        # Full-f32 PyTorch-semantics reference.
        h = jnp.maximum(xin @ w1.T + b1, 0.0)
        h = jnp.maximum(h @ w2.T + b2, 0.0)
        logit = (h @ wo.T + bo).reshape(-1)
        return jax.nn.sigmoid(logit)

    tol = 2.5e-2  # bf16 weights/activations + approximate-reciprocal sigmoid vs f32 reference

    # Check 1: tiny batch (single small tile, tb == round_up(B, 8)).
    x_small = jax.random.normal(k_x, (8, n_inputs), jnp.float32)
    out_small = binary_classifier_mlp(x_small, params)
    jax.block_until_ready(out_small)
    assert out_small.shape == (8,)
    assert jnp.allclose(out_small, ref_forward(x_small), atol=tol)

    # Check 2: multi-tile grid with a ragged boundary block (B=300, tb=128 -> 3 tiles).
    x_mid = jax.random.normal(k_x2, (300, n_inputs), jnp.float32)
    out_mid = binary_classifier_mlp(x_mid, params, block_b=128)
    jax.block_until_ready(out_mid)
    assert out_mid.shape == (300,)
    assert jnp.allclose(out_mid, ref_forward(x_mid), atol=tol)

    # Check 3: default block_b path -> >= 2 lane-aligned tiles (feeds both v7x TCs), ragged tail.
    x_big = jax.random.normal(k_x3, (1000, n_inputs), jnp.float32)
    out_big = binary_classifier_mlp(x_big, params)
    jax.block_until_ready(out_big)
    assert out_big.shape == (1000,)
    assert jnp.allclose(out_big, ref_forward(x_big), atol=tol)
    assert bool(jnp.all((out_big >= 0.0) & (out_big <= 1.0)))

    print("KERNEL_OK")
</pallas_src>

<mosaic_0001>
module attributes {stable_mosaic.version = 11 : i64} {
  func.func @_mlp_kernel(%arg0: i32, %arg1: memref<8x16xf32, #tpu.memory_space<vmem>>, %arg2: memref<32x16xbf16, #tpu.memory_space<vmem>>, %arg3: memref<32x32xbf16, #tpu.memory_space<vmem>>, %arg4: memref<1x32xbf16, #tpu.memory_space<vmem>>, %arg5: memref<65x1xf32, #tpu.memory_space<vmem>>, %arg6: memref<1x8xf32, #tpu.memory_space<vmem>>) attributes {dimension_semantics = [#tpu.dimension_semantics<parallel>], iteration_bounds = array<i64: 1>, scalar_prefetch = 0 : i64, scratch_operands = 0 : i64, tpu.core_type = #tpu.core_type<tc>, window_params = [{transform_indices = @transform_0, window_bounds = array<i64: 8, 16>}, {pipeline_mode = #tpu.pipeline_mode<synchronous>, transform_indices = @transform_1, window_bounds = array<i64: 32, 16>}, {pipeline_mode = #tpu.pipeline_mode<synchronous>, transform_indices = @transform_2, window_bounds = array<i64: 32, 32>}, {pipeline_mode = #tpu.pipeline_mode<synchronous>, transform_indices = @transform_3, window_bounds = array<i64: 1, 32>}, {pipeline_mode = #tpu.pipeline_mode<synchronous>, transform_indices = @transform_4, window_bounds = array<i64: 65, 1>}, {transform_indices = @transform_5, window_bounds = array<i64: 1, 8>}]} {
    %c0 = arith.constant 0 : index
    %c0_0 = arith.constant 0 : index
    %0 = vector.load %arg1[%c0, %c0_0] : memref<8x16xf32, #tpu.memory_space<vmem>>, vector<8x16xf32>
    %1 = tpu.transpose %0, [1, 0] : vector<8x16xf32> -> vector<16x8xf32>
    %2 = arith.truncf %1 : vector<16x8xf32> to vector<16x8xbf16>
    %c0_1 = arith.constant 0 : index
    %c0_2 = arith.constant 0 : index
    %3 = vector.load %arg2[%c0_1, %c0_2] : memref<32x16xbf16, #tpu.memory_space<vmem>>, vector<32x16xbf16>
    %cst = arith.constant dense<0.000000e+00> : vector<32x8xf32>
    %4 = tpu.matmul %3, %2, %cst {dimension_numbers = #tpu.dot_dimension_numbers<[1], [0], [0], [1], [0, 0, 1, 1], [], []>} : vector<32x16xbf16>, vector<16x8xbf16>, vector<32x8xf32> -> vector<32x8xf32>
    %c0_3 = arith.constant 0 : index
    %c0_4 = arith.constant 0 : index
    %5 = vector.load %arg5[%c0_3, %c0_4] : memref<65x1xf32, #tpu.memory_space<vmem>>, vector<32x1xf32>
    %6 = vector.broadcast %5 : vector<32x1xf32> to vector<32x8xf32>
    %7 = arith.addf %4, %6 : vector<32x8xf32>
    %cst_5 = arith.constant 0.000000e+00 : f32
    %8 = vector.broadcast %cst_5 : f32 to vector<32x8xf32>
    %9 = arith.maximumf %7, %8 : vector<32x8xf32>
    %10 = arith.truncf %9 : vector<32x8xf32> to vector<32x8xbf16>
    %c0_6 = arith.constant 0 : index
    %c0_7 = arith.constant 0 : index
    %11 = vector.load %arg3[%c0_6, %c0_7] : memref<32x32xbf16, #tpu.memory_space<vmem>>, vector<32x32xbf16>
    %cst_8 = arith.constant dense<0.000000e+00> : vector<32x8xf32>
    %12 = tpu.matmul %11, %10, %cst_8 {dimension_numbers = #tpu.dot_dimension_numbers<[1], [0], [0], [1], [0, 0, 1, 1], [], []>} : vector<32x32xbf16>, vector<32x8xbf16>, vector<32x8xf32> -> vector<32x8xf32>
    %c32 = arith.constant 32 : index
    %c0_9 = arith.constant 0 : index
    %13 = vector.load %arg5[%c32, %c0_9] : memref<65x1xf32, #tpu.memory_space<vmem>>, vector<32x1xf32>
    %14 = vector.broadcast %13 : vector<32x1xf32> to vector<32x8xf32>
    %15 = arith.addf %12, %14 : vector<32x8xf32>
    %cst_10 = arith.constant 0.000000e+00 : f32
    %16 = vector.broadcast %cst_10 : f32 to vector<32x8xf32>
    %17 = arith.maximumf %15, %16 : vector<32x8xf32>
    %18 = arith.truncf %17 : vector<32x8xf32> to vector<32x8xbf16>
    %c0_11 = arith.constant 0 : index
    %c0_12 = arith.constant 0 : index
    %19 = vector.load %arg4[%c0_11, %c0_12] : memref<1x32xbf16, #tpu.memory_space<vmem>>, vector<1x32xbf16>
    %cst_13 = arith.constant dense<0.000000e+00> : vector<1x8xf32>
    %20 = tpu.matmul %19, %18, %cst_13 {dimension_numbers = #tpu.dot_dimension_numbers<[1], [0], [0], [1], [0, 0, 1, 1], [], []>} : vector<1x32xbf16>, vector<32x8xbf16>, vector<1x8xf32> -> vector<1x8xf32>
    %c64 = arith.constant 64 : index
    %c0_14 = arith.constant 0 : index
    %21 = vector.load %arg5[%c64, %c0_14] : memref<65x1xf32, #tpu.memory_space<vmem>>, vector<1x1xf32>
    %22 = vector.broadcast %21 : vector<1x1xf32> to vector<1x8xf32>
    %23 = arith.addf %20, %22 : vector<1x8xf32>
    %cst_15 = arith.constant 0.000000e+00 : f32
    %24 = vector.broadcast %cst_15 : f32 to vector<1x8xf32>
    %25 = arith.subf %24, %23 : vector<1x8xf32>
    %26 = math.exp %25 : vector<1x8xf32>
    %cst_16 = arith.constant 1.000000e+00 : f32
    %27 = vector.broadcast %cst_16 : f32 to vector<1x8xf32>
    %28 = arith.addf %27, %26 : vector<1x8xf32>
    %29 = tpu.reciprocal %28 {approx = true} : vector<1x8xf32> -> vector<1x8xf32>
    %cst_17 = arith.constant 0.000000e+00 : f32
    %cst_18 = arith.constant 1.000000e+00 : f32
    %30 = vector.broadcast %cst_17 : f32 to vector<1x8xf32>
    %31 = arith.maximumf %30, %29 : vector<1x8xf32>
    %32 = vector.broadcast %cst_18 : f32 to vector<1x8xf32>
    %33 = arith.minimumf %32, %31 : vector<1x8xf32>
    %c0_19 = arith.constant 0 : index
    %c0_20 = arith.constant 0 : index
    %34 = vector.load %arg6[%c0_19, %c0_20] : memref<1x8xf32, #tpu.memory_space<vmem>>, vector<1x8xf32>
    tpu.vector_store %arg6[%c0_19, %c0_20], %33 {strides = array<i32>} : memref<1x8xf32, #tpu.memory_space<vmem>>, vector<1x8xf32>,
    return
  }
  func.func @transform_0(%arg0: i32) -> (i32, i32) {
    %c0_i32 = arith.constant 0 : i32
    %c0_i32_0 = arith.constant 0 : i32
    return %arg0, %c0_i32 : i32, i32
  }
  func.func @transform_1(%arg0: i32) -> (i32, i32) {
    %c0_i32 = arith.constant 0 : i32
    %c0_i32_0 = arith.constant 0 : i32
    %c0_i32_1 = arith.constant 0 : i32
    return %c0_i32, %c0_i32_0 : i32, i32
  }
  func.func @transform_2(%arg0: i32) -> (i32, i32) {
    %c0_i32 = arith.constant 0 : i32
    %c0_i32_0 = arith.constant 0 : i32
    %c0_i32_1 = arith.constant 0 : i32
    return %c0_i32, %c0_i32_0 : i32, i32
  }
  func.func @transform_3(%arg0: i32) -> (i32, i32) {
    %c0_i32 = arith.constant 0 : i32
    %c0_i32_0 = arith.constant 0 : i32
    %c0_i32_1 = arith.constant 0 : i32
    return %c0_i32, %c0_i32_0 : i32, i32
  }
  func.func @transform_4(%arg0: i32) -> (i32, i32) {
    %c0_i32 = arith.constant 0 : i32
    %c0_i32_0 = arith.constant 0 : i32
    %c0_i32_1 = arith.constant 0 : i32
    return %c0_i32, %c0_i32_0 : i32, i32
  }
  func.func @transform_5(%arg0: i32) -> (i32, i32) {
    %c0_i32 = arith.constant 0 : i32
    %c0_i32_0 = arith.constant 0 : i32
    return %arg0, %c0_i32 : i32, i32
  }
}

</mosaic_0001>

<llo_original>
// kernel: binary_classifier_mlp.1
$region0: #{binary_classifier_mlp.1}
  #allocation0 [shape = 'u32[]', space=smem, size = 0x4, offset = 0x4, fixed_abs, tag = 'smem constant byte address 0x4 - core index']
  #allocation1 [shape = 'u32[144,128]{1,0:T(1,128)}', space=vmem, size = 0x12000, scoped, tag = 'internal scratch']
  %s0 = inlined_call_operand.vmem [shape: f32[8,16], index: 0, kind: input, shape index: {}]
  %s1 = inlined_call_operand.vmem [shape: bf16[32,16], index: 1, kind: input, shape index: {}]
  %s2 = inlined_call_operand.vmem [shape: bf16[32,32], index: 2, kind: input, shape index: {}]
  %s3 = inlined_call_operand.vmem [shape: bf16[1,32], index: 3, kind: input, shape index: {}]
  %s4 = inlined_call_operand.vmem [shape: f32[65,1], index: 4, kind: input, shape index: {}]
  %s5 = inlined_call_operand.hbm [shape: f32[1,8], index: 5, kind: output, shape index: {}]
  %s6 = sld [smem:[#allocation0]]
  $region30: #{binary_classifier_mlp.1} parent=0
    _
  %s8 = ssub.s32 1, %s6
  %s9 = scalar_select 0, %s8, %s6
  $region1: #{binary_classifier_mlp.1} parent=0
    #allocation2 [shape = 'u8[512]{0}', space=vmem, size = 0x400, scoped, tag = 'output window, operand 0, single buffered']
    #allocation3 [shape = 's32[1]{0}', space=sflag, size = 0x4, scoped, tag = 'scoped memory for binary_classifier_mlp.1']
    %10 = vsyncpa [#allocation3], 0
    // Predicated region
    $region2: #{binary_classifier_mlp.1} parent=1 // pred_check
      _
    $region3: #{binary_classifier_mlp.1} parent=1 // pred_check_branch
      %12 = sbr.rel (0) target = $region5
    $region4: #{binary_classifier_mlp.1} parent=1 // pred_region
      _
    $region5: #{binary_classifier_mlp.1} parent=1 // pred_fallthru
      _
    // Predicated region
    $region6: #{binary_classifier_mlp.1} parent=1 // pred_check
      _
    $region7: #{binary_classifier_mlp.1} parent=1 // pred_check_branch
      %14 = sbr.rel (0) target = $region9
    $region8: #{binary_classifier_mlp.1} parent=1 // pred_region
      _
    $region9: #{binary_classifier_mlp.1} parent=1 // pred_fallthru
      _
    // Predicated region
    $region10: #{binary_classifier_mlp.1} parent=1 // pred_check
      _
    $region11: #{binary_classifier_mlp.1} parent=1 // pred_check_branch
      %16 = sbr.rel (0) target = $region13
    $region12: #{binary_classifier_mlp.1} parent=1 // pred_region
      _
    $region13: #{binary_classifier_mlp.1} parent=1 // pred_fallthru
      _
    // Predicated region
    $region14: #{binary_classifier_mlp.1} parent=1 // pred_check
      _
    $region15: #{binary_classifier_mlp.1} parent=1 // pred_check_branch
      %18 = sbr.rel (0) target = $region17
    $region16: #{binary_classifier_mlp.1} parent=1 // pred_region
      _
    $region17: #{binary_classifier_mlp.1} parent=1 // pred_fallthru
      _
    // Predicated region
    $region18: #{binary_classifier_mlp.1} parent=1 // pred_check
      _
    $region19: #{binary_classifier_mlp.1} parent=1 // pred_check_branch
      %20 = sbr.rel (0) target = $region21
    $region20: #{binary_classifier_mlp.1} parent=1 // pred_region
      _
    $region21: #{binary_classifier_mlp.1} parent=1 // pred_fallthru
      _
    %v22 = vld [vmem:[%s0] sm:$0xff]
    %23 = vxpose.xlu0.b32.start [1/16] %v22, 128
    %24 = vxpose.xlu0.b32.cont [2/16] 0.0, 128
    %25 = vxpose.xlu0.b32.cont [3/16] 0.0, 128
    %26 = vxpose.xlu0.b32.cont [4/16] 0.0, 128
    %27 = vxpose.xlu0.b32.cont [5/16] 0.0, 128
    %28 = vxpose.xlu0.b32.cont [6/16] 0.0, 128
    %29 = vxpose.xlu0.b32.cont [7/16] 0.0, 128
    %30 = vxpose.xlu0.b32.cont [8/16] 0.0, 128
    %31 = vxpose.xlu0.b32.cont [9/16] 0.0, 128
    %32 = vxpose.xlu0.b32.cont [10/16] 0.0, 128
    %33 = vxpose.xlu0.b32.cont [11/16] 0.0, 128
    %34 = vxpose.xlu0.b32.cont [12/16] 0.0, 128
    %35 = vxpose.xlu0.b32.cont [13/16] 0.0, 128
    %36 = vxpose.xlu0.b32.cont [14/16] 0.0, 128
    %37 = vxpose.xlu0.b32.cont [15/16] 0.0, 128
    %38 = vxpose.xlu0.b32.end [16/16] 0.0, 128
    %v39 = vpop.trf.xlu0
    %v40 = vpop.trf.xlu0
    %v41 = vpop.trf.xlu0
    %v42 = vpop.trf.xlu0
    %v43 = vpop.trf.xlu0
    %v44 = vpop.trf.xlu0
    %v45 = vpop.trf.xlu0
    %v46 = vpop.trf.xlu0
    %v47 = vpop.trf.xlu0
    %v48 = vpop.trf.xlu0
    %v49 = vpop.trf.xlu0
    %v50 = vpop.trf.xlu0
    %v51 = vpop.trf.xlu0
    %v52 = vpop.trf.xlu0
    %v53 = vpop.trf.xlu0
    %v54 = vpop.trf.xlu0
    %v55 = vpack.c.bf16 %v40, %v39
    %v56 = vld [vmem:[%s1] sm:$0xf]
    %v57 = vld [vmem:[%s1 + $0x4] sm:$0xf]
    %v58 = vld [vmem:[%s1 + $0x8] sm:$0xf]
    %v59 = vld [vmem:[%s1 + $0xc] sm:$0xf]
    %v60 = vld [vmem:[%s4] sm:$0xff]
    %v61 = vld [vmem:[%s4 + $0x8] sm:$0xff]
    %v62 = vld [vmem:[%s4 + $0x10] sm:$0xff]
    %v63 = vld [vmem:[%s4 + $0x18] sm:$0xff]
    %65 = vset.pattern.permute.xlu0 0
    %66 = vperm.xlu0 %65, %v60
    %v67 = vpop.permute.xlu0 %66
    %70 = vset.pattern.permute.xlu0 0
    %71 = vperm.xlu0 %70, %v61
    %v72 = vpop.permute.xlu0 %71
    %75 = vset.pattern.permute.xlu0 0
    %76 = vperm.xlu0 %75, %v62
    %v77 = vpop.permute.xlu0 %76
    %80 = vset.pattern.permute.xlu0 0
    %81 = vperm.xlu0 %80, %v63
    %v82 = vpop.permute.xlu0 %81
    %v88 = vunpack.c.l.b16 %v56
    %v89 = vunpack.c.l.b16 %v57
    %v90 = vunpack.c.l.b16 %v58
    %v91 = vunpack.c.l.b16 %v59
    %v92 = vpack.c.b16 %v89, %v88
    %v93 = vpack.c.b16 %v91, %v90
    %vm94 = vcmask 130048
    %v96 = vsel %vm94, %v92, 0
    %v99 = vsel %vm94, %v93, 0
    %101 = vmatprep.subr.bf16.mxu0 0
    %102 = vmatpush1.bf16.msra.mxu0 0
    %103 = vmatprep.subr.bf16.mxu0 0
    %104 = vmatpush1.bf16.msra.mxu0 0
    %105 = vmatprep.subr.bf16.mxu0 0
    %106 = vmatpush1.bf16.msra.mxu0 0
    %107 = vmatprep.subr.bf16.mxu0 0
    %108 = vmatpush1.bf16.msra.mxu0 0
    %109 = vmatprep.subr.bf16.mxu0 0
    %110 = vmatpush1.bf16.msra.mxu0 0
    %111 = vmatprep.subr.bf16.mxu0 0
    %112 = vmatpush1.bf16.msra.mxu0 0
    %113 = vmatprep.subr.bf16.mxu0 0
    %114 = vmatpush1.bf16.msra.mxu0 0
    %115 = vmatprep.subr.bf16.mxu0 0
    %116 = vmatpush1.bf16.msra.mxu0 %v55
    %117 = vmatprep.subr.bf16.mxu0 0
    %118 = vmatpush2.bf16.msra.mxu0 0
    %119 = vmatprep.subr.bf16.mxu0 0
    %120 = vmatpush2.bf16.msra.mxu0 0
    %121 = vmatprep.subr.bf16.mxu0 0
    %122 = vmatpush2.bf16.msra.mxu0 0
    %123 = vmatprep.subr.bf16.mxu0 0
    %124 = vmatpush2.bf16.msra.mxu0 0
    %125 = vmatprep.subr.bf16.mxu0 0
    %126 = vmatpush2.bf16.msra.mxu0 0
    %127 = vmatprep.subr.bf16.mxu0 0
    %128 = vmatpush2.bf16.msra.mxu0 0
    %129 = vmatprep.subr.bf16.mxu0 0
    %130 = vmatpush2.bf16.msra.mxu0 0
    %131 = vmatprep.subr.bf16.mxu0 0
    %132 = vmatpush2.bf16.msra.mxu0 0
    %133 = vmatprep.mubr.bf16.mxu0 0
    %134 = vmatmul.mubr.bf16.gmra.mxu0 %v96
    %v135 = vpop.f32.mrf.mxu0
    %v136 = vadd.f32 %v67, %v135
    %v137 = vpop.f32.mrf.mxu0
    %v138 = vpop.f32.mrf.mxu0
    %v139 = vadd.f32 %v72, %v138
    %v140 = vpop.f32.mrf.mxu0
    %141 = vmatprep.mubr.bf16.mxu0 0
    %142 = vmatmul.mubr.bf16.gmra.mxu0 %v99
    %v143 = vpop.f32.mrf.mxu0
    %v144 = vadd.f32 %v77, %v143
    %v145 = vpop.f32.mrf.mxu0
    %v146 = vpop.f32.mrf.mxu0
    %v147 = vadd.f32 %v82, %v146
    %v148 = vpop.f32.mrf.mxu0
    %149 = vdwg.mxu0
    %v150 = vmax.f32 %v136, 0.0
    %v151 = vmax.f32 %v139, 0.0
    %v152 = vmax.f32 %v144, 0.0
    %v153 = vmax.f32 %v147, 0.0
    %v154 = vpack.c.bf16 %v151, %v150
    %v155 = vpack.c.bf16 %v153, %v152
    %v156 = vld [vmem:[%s2] sm:$0xf]
    %v157 = vld [vmem:[%s2 + $0x4] sm:$0xf]
    %v158 = vld [vmem:[%s2 + $0x8] sm:$0xf]
    %v159 = vld [vmem:[%s2 + $0xc] sm:$0xf]
    %v160 = vld [vmem:[%s4 + $0x20] sm:$0xff]
    %v161 = vld [vmem:[%s4 + $0x28] sm:$0xff]
    %v162 = vld [vmem:[%s4 + $0x30] sm:$0xff]
    %v163 = vld [vmem:[%s4 + $0x38] sm:$0xff]
    %165 = vset.pattern.permute.xlu0 0
    %166 = vperm.xlu0 %165, %v160
    %v167 = vpop.permute.xlu0 %166
    %170 = vset.pattern.permute.xlu0 0
    %171 = vperm.xlu0 %170, %v161
    %v172 = vpop.permute.xlu0 %171
    %175 = vset.pattern.permute.xlu0 0
    %176 = vperm.xlu0 %175, %v162
    %v177 = vpop.permute.xlu0 %176
    %180 = vset.pattern.permute.xlu0 0
    %181 = vperm.xlu0 %180, %v163
    %v182 = vpop.permute.xlu0 %181
    %v188 = vunpack.c.l.b16 %v156
    %v189 = vunpack.c.l.b16 %v157
    %v190 = vunpack.c.l.b16 %v158
    %v191 = vunpack.c.l.b16 %v159
    %v192 = vpack.c.b16 %v189, %v188
    %v193 = vpack.c.b16 %v191, %v190
    %vm194 = vcmask 261120
    %v196 = vsel %vm194, %v192, 0
    %v199 = vsel %vm194, %v193, 0
    %201 = vmatprep.subr.bf16.mxu0 0
    %202 = vmatpush1.bf16.msra.mxu0 0
    %203 = vmatprep.subr.bf16.mxu0 0
    %204 = vmatpush1.bf16.msra.mxu0 0
    %205 = vmatprep.subr.bf16.mxu0 0
    %206 = vmatpush1.bf16.msra.mxu0 0
    %207 = vmatprep.subr.bf16.mxu0 0
    %208 = vmatpush1.bf16.msra.mxu0 0
    %209 = vmatprep.subr.bf16.mxu0 0
    %210 = vmatpush1.bf16.msra.mxu0 0
    %211 = vmatprep.subr.bf16.mxu0 0
    %212 = vmatpush1.bf16.msra.mxu0 0
    %213 = vmatprep.subr.bf16.mxu0 0
    %214 = vmatpush1.bf16.msra.mxu0 %v155
    %215 = vmatprep.subr.bf16.mxu0 0
    %216 = vmatpush1.bf16.msra.mxu0 %v154
    %217 = vmatprep.subr.bf16.mxu0 0
    %218 = vmatpush2.bf16.msra.mxu0 0
    %219 = vmatprep.subr.bf16.mxu0 0
    %220 = vmatpush2.bf16.msra.mxu0 0
    %221 = vmatprep.subr.bf16.mxu0 0
    %222 = vmatpush2.bf16.msra.mxu0 0
    %223 = vmatprep.subr.bf16.mxu0 0
    %224 = vmatpush2.bf16.msra.mxu0 0
    %225 = vmatprep.subr.bf16.mxu0 0
    %226 = vmatpush2.bf16.msra.mxu0 0
    %227 = vmatprep.subr.bf16.mxu0 0
    %228 = vmatpush2.bf16.msra.mxu0 0
    %229 = vmatprep.subr.bf16.mxu0 0
    %230 = vmatpush2.bf16.msra.mxu0 0
    %231 = vmatprep.subr.bf16.mxu0 0
    %232 = vmatpush2.bf16.msra.mxu0 0
    %233 = vmatprep.mubr.bf16.mxu0 0
    %234 = vmatmul.mubr.bf16.gmra.mxu0 %v196
    %v235 = vpop.f32.mrf.mxu0
    %v236 = vadd.f32 %v167, %v235
    %v237 = vpop.f32.mrf.mxu0
    %v238 = vpop.f32.mrf.mxu0
    %v239 = vadd.f32 %v172, %v238
    %v240 = vpop.f32.mrf.mxu0
    %241 = vmatprep.mubr.bf16.mxu0 0
    %242 = vmatmul.mubr.bf16.gmra.mxu0 %v199
    %v243 = vpop.f32.mrf.mxu0
    %v244 = vadd.f32 %v177, %v243
    %v245 = vpop.f32.mrf.mxu0
    %v246 = vpop.f32.mrf.mxu0
    %v247 = vadd.f32 %v182, %v246
    %v248 = vpop.f32.mrf.mxu0
    %249 = vdwg.mxu0
    %v250 = vmax.f32 %v236, 0.0
    %v251 = vmax.f32 %v239, 0.0
    %v252 = vmax.f32 %v244, 0.0
    %v253 = vmax.f32 %v247, 0.0
    %v254 = vpack.c.bf16 %v251, %v250
    %v255 = vpack.c.bf16 %v253, %v252
    %v256 = vld [vmem:[%s3] sm:$0x1]
    %v257 = vld [vmem:[%s4 + $0x40] sm:$0x1]
    %259 = vset.pattern.permute.xlu0 0
    %260 = vperm.xlu0 %259, %v257
    %v261 = vpop.permute.xlu0 %260
    %v264 = vsel %vm194, %v256, 0
    %266 = vmatprep.subr.bf16.mxu0 0
    %267 = vmatpush1.bf16.msra.mxu0 0
    %268 = vmatprep.subr.bf16.mxu0 0
    %269 = vmatpush1.bf16.msra.mxu0 0
    %270 = vmatprep.subr.bf16.mxu0 0
    %271 = vmatpush1.bf16.msra.mxu0 0
    %272 = vmatprep.subr.bf16.mxu0 0
    %273 = vmatpush1.bf16.msra.mxu0 0
    %274 = vmatprep.subr.bf16.mxu0 0
    %275 = vmatpush1.bf16.msra.mxu0 0
    %276 = vmatprep.subr.bf16.mxu0 0
    %277 = vmatpush1.bf16.msra.mxu0 0
    %278 = vmatprep.subr.bf16.mxu0 0
    %279 = vmatpush1.bf16.msra.mxu0 %v255
    %280 = vmatprep.subr.bf16.mxu0 0
    %281 = vmatpush1.bf16.msra.mxu0 %v254
    %282 = vmatprep.subr.bf16.mxu0 0
    %283 = vmatpush2.bf16.msra.mxu0 0
    %284 = vmatprep.subr.bf16.mxu0 0
    %285 = vmatpush2.bf16.msra.mxu0 0
    %286 = vmatprep.subr.bf16.mxu0 0
    %287 = vmatpush2.bf16.msra.mxu0 0
    %288 = vmatprep.subr.bf16.mxu0 0
    %289 = vmatpush2.bf16.msra.mxu0 0
    %290 = vmatprep.subr.bf16.mxu0 0
    %291 = vmatpush2.bf16.msra.mxu0 0
    %292 = vmatprep.subr.bf16.mxu0 0
    %293 = vmatpush2.bf16.msra.mxu0 0
    %294 = vmatprep.subr.bf16.mxu0 0
    %295 = vmatpush2.bf16.msra.mxu0 0
    %296 = vmatprep.subr.bf16.mxu0 0
    %297 = vmatpush2.bf16.msra.mxu0 0
    %298 = vmatprep.mubr.bf16.mxu0 0
    %299 = vmatmul.mubr.bf16.gmra.mxu0 %v264
    %v300 = vpop.f32.mrf.mxu0
    %v301 = vadd.f32 %v261, %v300
    %v302 = vpop.f32.mrf.mxu0
    %v303 = vpop.f32.mrf.mxu0
    %v304 = vpop.f32.mrf.mxu0
    %305 = vdwg.mxu0
    %v306 = vsub.f32 0.0, %v301
    %v307 = vmul.f32 %v306, 1.442695
    %v308 = vpow.pop %v307
    %v309 = vadd.f32 %v308, 1.0
    %v310 = vrcp.pop %v309
    %v311 = vmax.f32 %v310, 0.0
    %v312 = vmin.f32 %v311, 1.0
    %vm313 = vcmask 57344
    %314 = vst.msk [vmem:[#allocation2] sm:$0x1] %vm313, %v312
    // Predicated region
    $region22: #{binary_classifier_mlp.1} parent=1 // pred_check
      _
    $region23: #{binary_classifier_mlp.1} parent=1 // pred_check_branch
      %316 = sbr.rel (0) target = $region25
    $region24: #{binary_classifier_mlp.1} parent=1 // pred_region
      %s318 = ssub.s32 16, 16
      %319 = vsyncadd [#allocation3], %s318
      %s321 = sshll.u32 [#allocation2], 4
      %s322 = int_to_ptr.vmem [resolvable:$true] %s321
      %324 = dma.vmem_to_hbm [thread:$0]  %s322, 16, %s5, [#allocation3]
    $region25: #{binary_classifier_mlp.1} parent=1 // pred_fallthru
      _
    // Predicated region
    $region26: #{binary_classifier_mlp.1} parent=1 // pred_check
      _
    $region27: #{binary_classifier_mlp.1} parent=1 // pred_check_branch
      %326 = sbr.rel (0) target = $region29
    $region28: #{binary_classifier_mlp.1} parent=1 // pred_region
      %327 = dma.done [#allocation3], 16
    $region29: #{binary_classifier_mlp.1} parent=1 // pred_fallthru
      _
    %328 = vsyncpa [#allocation3], 1

</llo_original>
